<compile_context>
chip_gen: v7x
topology: tpu7x:2x2x1
jax: 0.10.0
libtpu: 0.0.40
codegen_flags: <defaults>
</compile_context>

<pallas_src>
import jax
import jax.numpy as jnp
from jax.experimental import pallas as pl
from jax.experimental.pallas import tpu as pltpu


# ---------------------------------------------------------------------------
# Primary path: Identity.forward(x) == x.  Fastest correct implementation is
# to return x directly (no pallas_call dispatch, no opaque barrier for XLA).
# ---------------------------------------------------------------------------
def identity(x):
    return x


# ---------------------------------------------------------------------------
# Optional path: aliased no-op custom call, for callers that require a Pallas
# kernel in the graph.  Zero-copy ONLY when the caller donates x
# (jax.jit(..., donate_argnums=...)); otherwise XLA adds one defensive copy.
# ---------------------------------------------------------------------------
def _noop_kernel(x_hbm_ref, o_hbm_ref):
    del x_hbm_ref, o_hbm_ref  # output aliases input: nothing to move


def identity_aliased(x):
    return pl.pallas_call(
        _noop_kernel,
        out_shape=jax.ShapeDtypeStruct(x.shape, x.dtype),
        in_specs=[pl.BlockSpec(memory_space=pl.ANY)],
        out_specs=pl.BlockSpec(memory_space=pl.ANY),
        input_output_aliases={0: 0},
    )(x)


# ---------------------------------------------------------------------------
# Fresh-buffer path: chunked direct HBM->HBM DMA (no VMEM round trip).
# ---------------------------------------------------------------------------
_CHUNK_BYTES = 8 << 20   # ~8 MiB per DMA chunk (DMA only; no VMEM constraint)
_MAX_INFLIGHT = 4        # DMA copies in flight (use multiple DMA engines)
_SUBLANE_PACK = {1: 32, 2: 16, 4: 8}  # itemsize -> sublane packing multiple


def _make_dma_copy_kernel(chunks, inflight):
    """chunks: list of static (row_start, row_size) along axis 0."""
    n_chunks = len(chunks)

    def kernel(x_hbm, o_hbm, sem):
        def dma(c, slot):
            start, size = chunks[c]
            if n_chunks == 1:
                src, dst = x_hbm, o_hbm          # whole-array copy: full refs
            else:
                src = x_hbm.at[pl.ds(start, size)]
                dst = o_hbm.at[pl.ds(start, size)]
            return pltpu.make_async_copy(src, dst, sem.at[slot])

        # Prime up to `inflight` copies, then slide the window.
        for c in range(min(inflight, n_chunks)):
            dma(c, c % inflight).start()
        for c in range(n_chunks):
            dma(c, c % inflight).wait()
            nxt = c + inflight
            if nxt < n_chunks:
                dma(nxt, nxt % inflight).start()

    return kernel


def _dma_copy_call(arr, chunks, inflight, bytes_accessed):
    return pl.pallas_call(
        _make_dma_copy_kernel(chunks, inflight),
        out_shape=jax.ShapeDtypeStruct(arr.shape, arr.dtype),
        in_specs=[pl.BlockSpec(memory_space=pl.ANY)],
        out_specs=pl.BlockSpec(memory_space=pl.ANY),
        scratch_shapes=[pltpu.SemaphoreType.DMA((inflight,))],
        cost_estimate=pl.CostEstimate(
            flops=0, transcendentals=0, bytes_accessed=bytes_accessed),
    )(arr)


def identity_copy(x):
    """Identity.forward(x) materialized into a new buffer via direct DMA."""
    orig_shape = x.shape
    n = x.size
    itemsize = jnp.dtype(x.dtype).itemsize
    total_bytes = 2 * n * itemsize

    if n == 0:
        return jnp.zeros(orig_shape, x.dtype)

    if n % 128 == 0:
        # Lane-dense 2-D view (free contiguous reshape).  Chunk along rows,
        # boundaries aligned to the dtype's sublane-packing multiple.
        lanes = 128
        for cand in (4096, 2048, 1024, 512, 256):
            if n % cand == 0:
                lanes = cand
                break
        rows = n // lanes
        pack = _SUBLANE_PACK.get(itemsize, 8)
        chunk_rows = max(pack, _CHUNK_BYTES // (lanes * itemsize))
        chunk_rows = (chunk_rows // pack) * pack
        chunk_rows = min(chunk_rows, rows)

        chunks = []
        r = 0
        while r < rows:
            sz = min(chunk_rows, rows - r)
            chunks.append((r, sz))
            r += sz
        inflight = max(1, min(_MAX_INFLIGHT, len(chunks)))

        x2d = x.reshape(rows, lanes)
        out2d = _dma_copy_call(x2d, chunks, inflight, total_bytes)
        return out2d.reshape(orig_shape)

    # Ragged element count: one whole-array HBM->HBM DMA.  No VMEM is involved,
    # so arbitrarily large ragged inputs cannot hit VMEM limits.
    flat = x.reshape(-1)
    out = _dma_copy_call(flat, [(0, n)], 1, total_bytes)
    return out.reshape(orig_shape)


if __name__ == "__main__":
    key = jax.random.PRNGKey(0)
    x = jax.random.normal(key, (2, 4, 16, 16), dtype=jnp.float32)

    # Module semantics: forward(x) is a pure pass-through.
    y = identity(x)
    jax.block_until_ready(y)
    assert y.shape == x.shape and y.dtype == x.dtype
    assert bool(jnp.all(y == x))

    # Aliased no-op Pallas custom call (zero-copy when donated).
    y_alias = identity_aliased(x)
    jax.block_until_ready(y_alias)
    assert y_alias.shape == x.shape and y_alias.dtype == x.dtype
    assert bool(jnp.all(y_alias == x))

    # Fresh-buffer copy via direct HBM->HBM DMA.
    y_copy = identity_copy(x)
    jax.block_until_ready(y_copy)
    assert y_copy.shape == x.shape and y_copy.dtype == x.dtype
    assert bool(jnp.all(y_copy == x))

    print("KERNEL_OK")
</pallas_src>

<mosaic_0001>
module attributes {stable_mosaic.version = 11 : i64} {
  func.func @_noop_kernel(%arg0: memref<2x4x16x16xf32, #tpu.memory_space<any>>, %arg1: memref<2x4x16x16xf32, #tpu.memory_space<any>>) attributes {dimension_semantics = [], scalar_prefetch = 0 : i64, scratch_operands = 0 : i64, tpu.core_type = #tpu.core_type<tc>} {
    return
  }
}

</mosaic_0001>

<llo_original>
// kernel: tpu_custom_call.1
$region0: #{tpu_custom_call.1}
  #allocation0 [shape = 'u32[]', space=smem, size = 0x4, offset = 0x4, fixed_abs, tag = 'smem constant byte address 0x4 - core index']
  #allocation1 [shape = 'u32[144,128]{1,0:T(1,128)}', space=vmem, size = 0x12000, scoped, tag = 'internal scratch']
  %s0 = inlined_call_operand.hbm [shape: f32[2,4,16,16], index: 0, kind: input, shape index: {}, may-alias: {0,1}]
  %s1 = inlined_call_operand.hbm [shape: f32[2,4,16,16], index: 1, kind: output, shape index: {}, may-alias: {0,1}]
  %s2 = sld [smem:[#allocation0]]
  $region2: #{tpu_custom_call.1} parent=0
    _
  %s4 = ssub.s32 1, %s2
  %s5 = scalar_select 0, %s4, %s2

</llo_original>
